<compile_context>
chip_gen: v5e
topology: v5e:2x2
jax: 0.10.0
libtpu: 0.0.40
codegen_flags: <defaults>
</compile_context>

<pallas_src>
import jax
import jax.numpy as jnp
from jax.experimental import pallas as pl
from jax.experimental.pallas import tpu as pltpu


def dqn_kernel(x_ref, w1_ref, b1_ref, w2_ref, b2_ref, w3_ref, b3_ref, o_ref):
    # fc1 + relu  (x cast to bf16 on-chip; bf16 x bf16 -> f32 accumulate)
    x = x_ref[...].astype(jnp.bfloat16)
    h1 = jnp.dot(x, w1_ref[...], preferred_element_type=jnp.float32)
    h1 = jnp.maximum(h1 + b1_ref[...], 0.0)
    # fc2 + relu
    h2 = jnp.dot(h1.astype(jnp.bfloat16), w2_ref[...],
                 preferred_element_type=jnp.float32)
    h2 = jnp.maximum(h2 + b2_ref[...], 0.0)
    # fc3 (no activation); lane-padded columns of w3/b3 are zeros.
    out = jnp.dot(h2.astype(jnp.bfloat16), w3_ref[...],
                  preferred_element_type=jnp.float32)
    o_ref[...] = (out + b3_ref[...]).astype(o_ref.dtype)


def _round_up(n, m):
    return ((n + m - 1) // m) * m


def _choose_batch_tile(B):
    """Batch tile (multiple of 16 for bf16 sublane packing).

    Small batches: a single grid step (no per-step overhead to amortize).
    Larger batches: split into >=2 grid steps (pipelining + megacore sharding
    on v7x), with the tile capped at 4096 rows so the layout-padded VMEM
    footprint stays comfortably inside v7x's 64 MiB per-TC VMEM.
    """
    b16 = _round_up(B, 16)
    if b16 <= 1024:
        return b16
    return min(_round_up(pl.cdiv(B, 2), 16), 4096)


def _pad2d_bytes(rows, cols, itemsize):
    """Layout-padded VMEM footprint of a (rows, cols) block."""
    sublane = {4: 8, 2: 16, 1: 32}[itemsize]
    return _round_up(max(rows, 1), sublane) * _round_up(max(cols, 1), 128) * itemsize


def dqn_forward(x, params, *, batch_tile=None, lane_dense_out=True):
    """DQN forward pass via a single fused Pallas kernel.

    x: (B, input_size) float32
    params: dict with w1 (in,64), b1 (1,64), w2 (64,64), b2 (1,64),
            w3 (64,out), b3 (1,out)  -- all float32 (weights stored transposed
            vs. PyTorch so the kernel computes y = x @ W + b).
    """
    w1, b1, w2, b2, w3, b3 = (params[k] for k in ("w1", "b1", "w2", "b2", "w3", "b3"))
    B, in_dim = x.shape
    hidden = w1.shape[1]
    out_dim = w3.shape[1]

    # Lane-dense output: zero-pad the final-layer columns to a 128 multiple so
    # the output store/DMA is unmasked and dense; sliced back after the call.
    out_pad = out_dim
    if lane_dense_out and out_dim % 128 != 0:
        out_pad = _round_up(out_dim, 128)
        w3 = jnp.pad(w3, ((0, 0), (0, out_pad - out_dim)))
        b3 = jnp.pad(b3, ((0, 0), (0, out_pad - out_dim)))

    if batch_tile is None:
        batch_tile = _choose_batch_tile(B)
    batch_tile = max(16, _round_up(batch_tile, 16))

    # bf16 only on the (tiny, resident) weight operands; biases stay f32.
    w1_bf = w1.astype(jnp.bfloat16)
    w2_bf = w2.astype(jnp.bfloat16)
    w3_bf = w3.astype(jnp.bfloat16)

    # No batch padding: Pallas clips the partial final block (no cross-row
    # reduction, so garbage rows in the last tile are never written back).
    grid = (pl.cdiv(B, batch_tile),)

    def full(shape):
        return pl.BlockSpec(shape, lambda i: tuple(0 for _ in shape))

    # Scoped-VMEM budget using (sublane, 128)-layout-padded footprints:
    # 2x double-buffered x/out blocks + in-kernel intermediates + weights.
    bytes_x_tile = _pad2d_bytes(batch_tile, in_dim, 4)            # f32 x block
    bytes_out_tile = _pad2d_bytes(batch_tile, out_pad, 4)         # f32 out block
    bytes_interm = (_pad2d_bytes(batch_tile, in_dim, 2)           # x bf16 cast
                    + 2 * _pad2d_bytes(batch_tile, hidden, 4)     # h1, h2 f32
                    + 2 * _pad2d_bytes(batch_tile, hidden, 2)     # h1, h2 bf16
                    + _pad2d_bytes(batch_tile, out_pad, 4))       # pre-store f32
    bytes_weights_vmem = (_pad2d_bytes(in_dim, hidden, 2)
                          + _pad2d_bytes(hidden, hidden, 2)
                          + _pad2d_bytes(hidden, out_pad, 2)
                          + 2 * _pad2d_bytes(1, hidden, 4)
                          + _pad2d_bytes(1, out_pad, 4))
    vmem_est = (2 * bytes_x_tile + 2 * bytes_out_tile
                + bytes_interm + 2 * bytes_weights_vmem)
    vmem_limit = int(min(max(int(1.5 * vmem_est), 16 * 2**20), 56 * 2**20))

    # Advisory cost estimate (HBM-true byte counts, not padded).
    bytes_weights_hbm = ((in_dim * hidden + hidden * hidden + hidden * out_pad) * 2
                         + (2 * hidden + out_pad) * 4)
    flops = 2 * B * (in_dim * hidden + hidden * hidden + hidden * out_pad)
    bytes_accessed = (B * in_dim * 4          # x (f32) read
                      + B * out_pad * 4       # out (f32) write
                      + bytes_weights_hbm)

    out = pl.pallas_call(
        dqn_kernel,
        out_shape=jax.ShapeDtypeStruct((B, out_pad), jnp.float32),
        grid_spec=pltpu.PrefetchScalarGridSpec(
            num_scalar_prefetch=0,
            grid=grid,
            in_specs=[
                pl.BlockSpec((batch_tile, in_dim), lambda i: (i, 0)),
                full(w1_bf.shape), full(b1.shape),
                full(w2_bf.shape), full(b2.shape),
                full(w3_bf.shape), full(b3.shape),
            ],
            out_specs=pl.BlockSpec((batch_tile, out_pad), lambda i: (i, 0)),
        ),
        compiler_params=pltpu.CompilerParams(
            dimension_semantics=("parallel",),
            vmem_limit_bytes=vmem_limit,
        ),
        cost_estimate=pl.CostEstimate(
            flops=flops, transcendentals=0, bytes_accessed=bytes_accessed),
    )(x, w1_bf, b1, w2_bf, b2, w3_bf, b3)

    if out_pad != out_dim:
        out = out[:, :out_dim]
    return out


def init_dqn_params(key, input_size, output_size, hidden=64):
    """Deterministic synthetic init matching nn.Linear shapes.

    PyTorch nn.Linear(in, out) has weight (out, in), bias (out,).
    We store the transposed weight (in, out) for the kernel.
    """
    k1, k2, k3, k4, k5, k6 = jax.random.split(key, 6)

    def uniform_init(k, shape, fan_in):
        bound = 1.0 / jnp.sqrt(fan_in)
        return jax.random.uniform(k, shape, jnp.float32, -bound, bound)

    return {
        "w1": uniform_init(k1, (input_size, hidden), input_size),
        "b1": uniform_init(k2, (1, hidden), input_size),
        "w2": uniform_init(k3, (hidden, hidden), hidden),
        "b2": uniform_init(k4, (1, hidden), hidden),
        "w3": uniform_init(k5, (hidden, output_size), hidden),
        "b3": uniform_init(k6, (1, output_size), hidden),
    }


def _reference(x, params):
    h1 = jnp.maximum(x @ params["w1"] + params["b1"], 0.0)
    h2 = jnp.maximum(h1 @ params["w2"] + params["b2"], 0.0)
    return h2 @ params["w3"] + params["b3"]


if __name__ == "__main__":
    key = jax.random.PRNGKey(0)
    batch, input_size, output_size = 8, 32, 4

    kx, kp, kx2 = jax.random.split(key, 3)
    params = init_dqn_params(kp, input_size, output_size)

    # Small inference-style batch (single grid step, partial block).
    x = jax.random.normal(kx, (batch, input_size), jnp.float32)
    out = jax.block_until_ready(dqn_forward(x, params))
    ref = _reference(x, params)
    assert out.shape == (batch, output_size)
    # bf16 matmul operands -> relaxed tolerance vs. the f32 reference.
    assert jnp.allclose(out, ref, atol=2e-2, rtol=2e-2)

    # Ragged batch exercises the pad-free partial-final-block path.
    x2 = jax.random.normal(kx2, (20, input_size), jnp.float32)
    out2 = jax.block_until_ready(dqn_forward(x2, params))
    ref2 = _reference(x2, params)
    assert out2.shape == (20, output_size)
    assert jnp.allclose(out2, ref2, atol=2e-2, rtol=2e-2)

    print("KERNEL_OK")
</pallas_src>

<mosaic_0001>
module attributes {stable_mosaic.version = 11 : i64} {
  func.func @dqn_kernel(%arg0: i32, %arg1: memref<16x32xf32, #tpu.memory_space<vmem>>, %arg2: memref<32x64xbf16, #tpu.memory_space<vmem>>, %arg3: memref<1x64xf32, #tpu.memory_space<vmem>>, %arg4: memref<64x64xbf16, #tpu.memory_space<vmem>>, %arg5: memref<1x64xf32, #tpu.memory_space<vmem>>, %arg6: memref<64x128xbf16, #tpu.memory_space<vmem>>, %arg7: memref<1x128xf32, #tpu.memory_space<vmem>>, %arg8: memref<16x128xf32, #tpu.memory_space<vmem>>) attributes {dimension_semantics = [#tpu.dimension_semantics<parallel>], iteration_bounds = array<i64: 1>, scalar_prefetch = 0 : i64, scratch_operands = 0 : i64, tpu.core_type = #tpu.core_type<tc>, window_params = [{transform_indices = @transform_0, window_bounds = array<i64: 16, 32>}, {pipeline_mode = #tpu.pipeline_mode<synchronous>, transform_indices = @transform_1, window_bounds = array<i64: 32, 64>}, {pipeline_mode = #tpu.pipeline_mode<synchronous>, transform_indices = @transform_2, window_bounds = array<i64: 1, 64>}, {pipeline_mode = #tpu.pipeline_mode<synchronous>, transform_indices = @transform_3, window_bounds = array<i64: 64, 64>}, {pipeline_mode = #tpu.pipeline_mode<synchronous>, transform_indices = @transform_4, window_bounds = array<i64: 1, 64>}, {pipeline_mode = #tpu.pipeline_mode<synchronous>, transform_indices = @transform_5, window_bounds = array<i64: 64, 128>}, {pipeline_mode = #tpu.pipeline_mode<synchronous>, transform_indices = @transform_6, window_bounds = array<i64: 1, 128>}, {transform_indices = @transform_7, window_bounds = array<i64: 16, 128>}]} {
    %c0 = arith.constant 0 : index
    %c0_0 = arith.constant 0 : index
    %0 = vector.load %arg1[%c0, %c0_0] : memref<16x32xf32, #tpu.memory_space<vmem>>, vector<16x32xf32>
    %1 = arith.truncf %0 : vector<16x32xf32> to vector<16x32xbf16>
    %c0_1 = arith.constant 0 : index
    %c0_2 = arith.constant 0 : index
    %2 = vector.load %arg2[%c0_1, %c0_2] : memref<32x64xbf16, #tpu.memory_space<vmem>>, vector<32x64xbf16>
    %cst = arith.constant dense<0.000000e+00> : vector<16x64xf32>
    %3 = tpu.matmul %1, %2, %cst {dimension_numbers = #tpu.dot_dimension_numbers<[1], [0], [0], [1], [0, 0, 1, 1], [], []>} : vector<16x32xbf16>, vector<32x64xbf16>, vector<16x64xf32> -> vector<16x64xf32>
    %c0_3 = arith.constant 0 : index
    %c0_4 = arith.constant 0 : index
    %4 = vector.load %arg3[%c0_3, %c0_4] : memref<1x64xf32, #tpu.memory_space<vmem>>, vector<1x64xf32>
    %5 = vector.broadcast %4 : vector<1x64xf32> to vector<16x64xf32>
    %6 = arith.addf %3, %5 : vector<16x64xf32>
    %cst_5 = arith.constant 0.000000e+00 : f32
    %7 = vector.broadcast %cst_5 : f32 to vector<16x64xf32>
    %8 = arith.maximumf %6, %7 : vector<16x64xf32>
    %9 = arith.truncf %8 : vector<16x64xf32> to vector<16x64xbf16>
    %c0_6 = arith.constant 0 : index
    %c0_7 = arith.constant 0 : index
    %10 = vector.load %arg4[%c0_6, %c0_7] : memref<64x64xbf16, #tpu.memory_space<vmem>>, vector<64x64xbf16>
    %cst_8 = arith.constant dense<0.000000e+00> : vector<16x64xf32>
    %11 = tpu.matmul %9, %10, %cst_8 {dimension_numbers = #tpu.dot_dimension_numbers<[1], [0], [0], [1], [0, 0, 1, 1], [], []>} : vector<16x64xbf16>, vector<64x64xbf16>, vector<16x64xf32> -> vector<16x64xf32>
    %c0_9 = arith.constant 0 : index
    %c0_10 = arith.constant 0 : index
    %12 = vector.load %arg5[%c0_9, %c0_10] : memref<1x64xf32, #tpu.memory_space<vmem>>, vector<1x64xf32>
    %13 = vector.broadcast %12 : vector<1x64xf32> to vector<16x64xf32>
    %14 = arith.addf %11, %13 : vector<16x64xf32>
    %cst_11 = arith.constant 0.000000e+00 : f32
    %15 = vector.broadcast %cst_11 : f32 to vector<16x64xf32>
    %16 = arith.maximumf %14, %15 : vector<16x64xf32>
    %17 = arith.truncf %16 : vector<16x64xf32> to vector<16x64xbf16>
    %c0_12 = arith.constant 0 : index
    %c0_13 = arith.constant 0 : index
    %18 = vector.load %arg6[%c0_12, %c0_13] : memref<64x128xbf16, #tpu.memory_space<vmem>>, vector<64x128xbf16>
    %cst_14 = arith.constant dense<0.000000e+00> : vector<16x128xf32>
    %19 = tpu.matmul %17, %18, %cst_14 {dimension_numbers = #tpu.dot_dimension_numbers<[1], [0], [0], [1], [0, 0, 1, 1], [], []>} : vector<16x64xbf16>, vector<64x128xbf16>, vector<16x128xf32> -> vector<16x128xf32>
    %c0_15 = arith.constant 0 : index
    %c0_16 = arith.constant 0 : index
    %20 = vector.load %arg7[%c0_15, %c0_16] : memref<1x128xf32, #tpu.memory_space<vmem>>, vector<1x128xf32>
    %21 = vector.broadcast %20 : vector<1x128xf32> to vector<16x128xf32>
    %22 = arith.addf %19, %21 : vector<16x128xf32>
    %c0_17 = arith.constant 0 : index
    %c0_18 = arith.constant 0 : index
    %23 = vector.load %arg8[%c0_17, %c0_18] : memref<16x128xf32, #tpu.memory_space<vmem>>, vector<16x128xf32>
    tpu.vector_store %arg8[%c0_17, %c0_18], %22 {strides = array<i32>} : memref<16x128xf32, #tpu.memory_space<vmem>>, vector<16x128xf32>,
    return
  }
  func.func @transform_0(%arg0: i32) -> (i32, i32) {
    %c0_i32 = arith.constant 0 : i32
    %c0_i32_0 = arith.constant 0 : i32
    return %arg0, %c0_i32 : i32, i32
  }
  func.func @transform_1(%arg0: i32) -> (i32, i32) {
    %c0_i32 = arith.constant 0 : i32
    %c0_i32_0 = arith.constant 0 : i32
    %c0_i32_1 = arith.constant 0 : i32
    return %c0_i32, %c0_i32_0 : i32, i32
  }
  func.func @transform_2(%arg0: i32) -> (i32, i32) {
    %c0_i32 = arith.constant 0 : i32
    %c0_i32_0 = arith.constant 0 : i32
    %c0_i32_1 = arith.constant 0 : i32
    return %c0_i32, %c0_i32_0 : i32, i32
  }
  func.func @transform_3(%arg0: i32) -> (i32, i32) {
    %c0_i32 = arith.constant 0 : i32
    %c0_i32_0 = arith.constant 0 : i32
    %c0_i32_1 = arith.constant 0 : i32
    return %c0_i32, %c0_i32_0 : i32, i32
  }
  func.func @transform_4(%arg0: i32) -> (i32, i32) {
    %c0_i32 = arith.constant 0 : i32
    %c0_i32_0 = arith.constant 0 : i32
    %c0_i32_1 = arith.constant 0 : i32
    return %c0_i32, %c0_i32_0 : i32, i32
  }
  func.func @transform_5(%arg0: i32) -> (i32, i32) {
    %c0_i32 = arith.constant 0 : i32
    %c0_i32_0 = arith.constant 0 : i32
    %c0_i32_1 = arith.constant 0 : i32
    return %c0_i32, %c0_i32_0 : i32, i32
  }
  func.func @transform_6(%arg0: i32) -> (i32, i32) {
    %c0_i32 = arith.constant 0 : i32
    %c0_i32_0 = arith.constant 0 : i32
    %c0_i32_1 = arith.constant 0 : i32
    return %c0_i32, %c0_i32_0 : i32, i32
  }
  func.func @transform_7(%arg0: i32) -> (i32, i32) {
    %c0_i32 = arith.constant 0 : i32
    %c0_i32_0 = arith.constant 0 : i32
    return %arg0, %c0_i32 : i32, i32
  }
}

</mosaic_0001>

<llo_original>
// kernel: tpu_custom_call.1
$region0: #{tpu_custom_call.1}
  #allocation0 [shape = 'u32[]', space=smem, size = 0x4, offset = 0x4, fixed_abs, tag = 'smem constant byte address 0x4 - core index']
  #allocation1 [shape = 'u32[72,128]{1,0:T(1,128)}', space=vmem, size = 0x9000, scoped, tag = 'internal scratch']
  %s0 = inlined_call_operand.hbm [shape: f32[8,32], index: 0, kind: input, shape index: {}]
  %s1 = inlined_call_operand.hbm [shape: bf16[32,64], index: 1, kind: input, shape index: {}]
  %s2 = inlined_call_operand.vmem [shape: f32[1,64], index: 2, kind: input, shape index: {}]
  %s3 = inlined_call_operand.hbm [shape: bf16[64,64], index: 3, kind: input, shape index: {}]
  %s4 = inlined_call_operand.vmem [shape: f32[1,64], index: 4, kind: input, shape index: {}]
  %s5 = inlined_call_operand.hbm [shape: bf16[64,128], index: 5, kind: input, shape index: {}]
  %s6 = inlined_call_operand.vmem [shape: f32[1,128], index: 6, kind: input, shape index: {}]
  %s7 = inlined_call_operand.hbm [shape: f32[8,128], index: 7, kind: output, shape index: {}]
  %s8 = sld [smem:[#allocation0]]
  $region54: #{tpu_custom_call.1} parent=0
    _
  %s10 = ssub.s32 1, %s8
  %s11 = scalar_select 0, %s10, %s8
  $region1: #{tpu_custom_call.1} parent=0
    #allocation2 [shape = 'u8[8192]{0}', space=vmem, size = 0x2000, scoped, tag = 'input window, operand 0, single buffered']
    #allocation3 [shape = 's32[1]{0}', space=sflag, size = 0x4, scoped, tag = 'scoped memory for tpu_custom_call.1']
    #allocation4 [shape = 's32[1]{0}', space=sflag, size = 0x4, scoped, tag = 'scoped memory for tpu_custom_call.1']
    #allocation5 [shape = 'u8[8192]{0}', space=vmem, size = 0x2000, scoped, tag = 'input window, operand 1, single buffered']
    #allocation6 [shape = 's32[1]{0}', space=sflag, size = 0x4, scoped, tag = 'scoped memory for tpu_custom_call.1']
    #allocation7 [shape = 'u8[16384]{0}', space=vmem, size = 0x4000, scoped, tag = 'input window, operand 3, single buffered']
    #allocation8 [shape = 'u8[16384]{0}', space=vmem, size = 0x4000, scoped, tag = 'input window, operand 5, single buffered']
    #allocation9 [shape = 's32[1]{0}', space=sflag, size = 0x4, scoped, tag = 'scoped memory for tpu_custom_call.1']
    #allocation10 [shape = 'u8[8192]{0}', space=vmem, size = 0x2000, scoped, tag = 'output window, operand 0, single buffered']
    %12 = vsyncpa [#allocation3], 0
    %13 = vsyncpa [#allocation6], 0
    %14 = vsyncpa [#allocation9], 0
    %15 = vsyncpa [#allocation4], 0
    // Predicated region
    $region2: #{tpu_custom_call.1} parent=1 // pred_check
      _
    $region3: #{tpu_custom_call.1} parent=1 // pred_check_branch
      %17 = sbr.rel (0) target = $region5
    $region4: #{tpu_custom_call.1} parent=1 // pred_region
      %19 = vsyncadd [#allocation3], 128
      %s20 = sshll.u32 %s0, 4
      %s21 = int_to_ptr.hbm [resolvable:$true] %s20
      %s22 = sshll.u32 [#allocation2], 4
      %s23 = int_to_ptr.vmem [resolvable:$true] %s22
      %28 = dma.hbm_to_vmem [thread:$0]  %s21, 128, %s23, [#allocation3], 128, 128, 8
    $region5: #{tpu_custom_call.1} parent=1 // pred_fallthru
      _
    // Predicated region
    $region6: #{tpu_custom_call.1} parent=1 // pred_check
      _
    $region7: #{tpu_custom_call.1} parent=1 // pred_check_branch
      %30 = sbr.rel (0) target = $region9
    $region8: #{tpu_custom_call.1} parent=1 // pred_region
      %32 = vsyncadd [#allocation6], 0
      %s33 = sshll.u32 %s1, 4
      %s34 = int_to_ptr.hbm [resolvable:$true] %s33
      %s35 = sshll.u32 [#allocation5], 4
      %s36 = int_to_ptr.vmem [resolvable:$true] %s35
      %41 = dma.hbm_to_vmem [thread:$0]  %s34, 256, %s36, [#allocation6], 64, 64, 4
    $region9: #{tpu_custom_call.1} parent=1 // pred_fallthru
      _
    // Predicated region
    $region10: #{tpu_custom_call.1} parent=1 // pred_check
      _
    $region11: #{tpu_custom_call.1} parent=1 // pred_check_branch
      %43 = sbr.rel (0) target = $region13
    $region12: #{tpu_custom_call.1} parent=1 // pred_region
      _
    $region13: #{tpu_custom_call.1} parent=1 // pred_fallthru
      _
    // Predicated region
    $region14: #{tpu_custom_call.1} parent=1 // pred_check
      _
    $region15: #{tpu_custom_call.1} parent=1 // pred_check_branch
      %45 = sbr.rel (0) target = $region17
    $region16: #{tpu_custom_call.1} parent=1 // pred_region
      %47 = vsyncadd [#allocation6], 0
      %s48 = sshll.u32 %s3, 4
      %s49 = int_to_ptr.hbm [resolvable:$true] %s48
      %s50 = sshll.u32 [#allocation7], 4
      %s51 = int_to_ptr.vmem [resolvable:$true] %s50
      %56 = dma.hbm_to_vmem [thread:$0]  %s49, 512, %s51, [#allocation6], 64, 64, 4
    $region17: #{tpu_custom_call.1} parent=1 // pred_fallthru
      _
    // Predicated region
    $region18: #{tpu_custom_call.1} parent=1 // pred_check
      _
    $region19: #{tpu_custom_call.1} parent=1 // pred_check_branch
      %58 = sbr.rel (0) target = $region21
    $region20: #{tpu_custom_call.1} parent=1 // pred_region
      _
    $region21: #{tpu_custom_call.1} parent=1 // pred_fallthru
      _
    // Predicated region
    $region22: #{tpu_custom_call.1} parent=1 // pred_check
      _
    $region23: #{tpu_custom_call.1} parent=1 // pred_check_branch
      %60 = sbr.rel (0) target = $region25
    $region24: #{tpu_custom_call.1} parent=1 // pred_region
      %62 = vsyncadd [#allocation9], 0
      %s63 = sshll.u32 %s5, 4
      %s64 = int_to_ptr.hbm [resolvable:$true] %s63
      %s65 = sshll.u32 [#allocation8], 4
      %s66 = int_to_ptr.vmem [resolvable:$true] %s65
      %71 = dma.hbm_to_vmem [thread:$0]  %s64, 512, %s66, [#allocation9], 64, 64, 4
    $region25: #{tpu_custom_call.1} parent=1 // pred_fallthru
      _
    // Predicated region
    $region26: #{tpu_custom_call.1} parent=1 // pred_check
      _
    $region27: #{tpu_custom_call.1} parent=1 // pred_check_branch
      %73 = sbr.rel (0) target = $region29
    $region28: #{tpu_custom_call.1} parent=1 // pred_region
      _
    $region29: #{tpu_custom_call.1} parent=1 // pred_fallthru
      _
    // Predicated region
    $region30: #{tpu_custom_call.1} parent=1 // pred_check
      _
    $region31: #{tpu_custom_call.1} parent=1 // pred_check_branch
      %75 = sbr.rel (0) target = $region33
    $region32: #{tpu_custom_call.1} parent=1 // pred_region
      %77 = dma.done [#allocation3], 256
    $region33: #{tpu_custom_call.1} parent=1 // pred_fallthru
      _
    // Predicated region
    $region34: #{tpu_custom_call.1} parent=1 // pred_check
      _
    $region35: #{tpu_custom_call.1} parent=1 // pred_check_branch
      %79 = sbr.rel (0) target = $region37
    $region36: #{tpu_custom_call.1} parent=1 // pred_region
      %81 = dma.done [#allocation6], 256
    $region37: #{tpu_custom_call.1} parent=1 // pred_fallthru
      _
    // Predicated region
    $region38: #{tpu_custom_call.1} parent=1 // pred_check
      _
    $region39: #{tpu_custom_call.1} parent=1 // pred_check_branch
      %83 = sbr.rel (0) target = $region41
    $region40: #{tpu_custom_call.1} parent=1 // pred_region
      %85 = dma.done [#allocation6], 512
    $region41: #{tpu_custom_call.1} parent=1 // pred_fallthru
      _
    // Predicated region
    $region42: #{tpu_custom_call.1} parent=1 // pred_check
      _
    $region43: #{tpu_custom_call.1} parent=1 // pred_check_branch
      %87 = sbr.rel (0) target = $region45
    $region44: #{tpu_custom_call.1} parent=1 // pred_region
      %89 = dma.done [#allocation9], 512
    $region45: #{tpu_custom_call.1} parent=1 // pred_fallthru
      _
    %v91 = vld [vmem:[#allocation2] sm:$0xff]
    %v92 = vld [vmem:[#allocation2 + $0x8] sm:$0xff]
    %v93 = vpack.c.bf16 %v92, %v91
    %v94 = vld [vmem:[#allocation5] sm:$0xf]
    %v95 = vld [vmem:[#allocation5 + $0x4] sm:$0xf]
    %v96 = vld [vmem:[#allocation5 + $0x8] sm:$0xf]
    %v97 = vld [vmem:[#allocation5 + $0xc] sm:$0xf]
    %v98 = vld [vmem:[%s2] sm:$0x1]
    %v100 = vperm.slane %v98, 0
    %v106 = vunpack.c.l.b16 %v94
    %v107 = vunpack.c.l.b16 %v95
    %v108 = vunpack.c.l.b16 %v96
    %v109 = vunpack.c.l.b16 %v97
    %v110 = vpack.c.b16 %v107, %v106
    %v111 = vpack.c.b16 %v109, %v108
    %vm114 = vcmask 261120
    %v116 = vsel %vm114, %v93, 0
    %118 = vmatpush.bf16.msra.mxu0 0
    %119 = vmatpush.bf16.msra.mxu0 0
    %120 = vmatpush.bf16.msra.mxu0 0
    %121 = vmatpush.bf16.msra.mxu0 0
    %122 = vmatpush.bf16.msra.mxu0 0
    %123 = vmatpush.bf16.msra.mxu0 0
    %124 = vmatpush.bf16.msra.mxu0 %v111
    %125 = vmatpush.bf16.msra.mxu0 %v110
    %126 = vmatmul.bf16.gmra.mxu0 %v116
    %v127 = vpop.f32.mrf.mxu0
    %v128 = vadd.f32 %v100, %v127
    %v129 = vpop.f32.mrf.mxu0
    %v130 = vadd.f32 %v100, %v129
    %131 = vdwg.mxu0
    %v132 = vmax.f32 %v128, 0.0
    %v133 = vmax.f32 %v130, 0.0
    %v134 = vpack.c.bf16 %v133, %v132
    %v135 = vld [vmem:[#allocation7] sm:$0xf]
    %v136 = vld [vmem:[#allocation7 + $0x4] sm:$0xf]
    %v137 = vld [vmem:[#allocation7 + $0x8] sm:$0xf]
    %v138 = vld [vmem:[#allocation7 + $0xc] sm:$0xf]
    %v139 = vld [vmem:[#allocation7 + $0x10] sm:$0xf]
    %v140 = vld [vmem:[#allocation7 + $0x14] sm:$0xf]
    %v141 = vld [vmem:[#allocation7 + $0x18] sm:$0xf]
    %v142 = vld [vmem:[#allocation7 + $0x1c] sm:$0xf]
    %v143 = vld [vmem:[%s4] sm:$0x1]
    %v145 = vperm.slane %v143, 0
    %v155 = vunpack.c.l.b16 %v135
    %v156 = vunpack.c.l.b16 %v136
    %v157 = vunpack.c.l.b16 %v137
    %v158 = vunpack.c.l.b16 %v138
    %v159 = vunpack.c.l.b16 %v139
    %v160 = vunpack.c.l.b16 %v140
    %v161 = vunpack.c.l.b16 %v141
    %v162 = vunpack.c.l.b16 %v142
    %v163 = vpack.c.b16 %v156, %v155
    %v164 = vpack.c.b16 %v158, %v157
    %v165 = vpack.c.b16 %v160, %v159
    %v166 = vpack.c.b16 %v162, %v161
    %vm171 = vcmask 523264
    %v173 = vsel %vm171, %v134, 0
    %175 = vmatpush.bf16.msra.mxu0 0
    %176 = vmatpush.bf16.msra.mxu0 0
    %177 = vmatpush.bf16.msra.mxu0 0
    %178 = vmatpush.bf16.msra.mxu0 0
    %179 = vmatpush.bf16.msra.mxu0 %v166
    %180 = vmatpush.bf16.msra.mxu0 %v165
    %181 = vmatpush.bf16.msra.mxu0 %v164
    %182 = vmatpush.bf16.msra.mxu0 %v163
    %183 = vmatmul.bf16.gmra.mxu0 %v173
    %v184 = vpop.f32.mrf.mxu0
    %v185 = vadd.f32 %v145, %v184
    %v186 = vpop.f32.mrf.mxu0
    %v187 = vadd.f32 %v145, %v186
    %188 = vdwg.mxu0
    %v189 = vmax.f32 %v185, 0.0
    %v190 = vmax.f32 %v187, 0.0
    %v191 = vpack.c.bf16 %v190, %v189
    %v192 = vld [vmem:[#allocation8] sm:$0xf]
    %v193 = vld [vmem:[#allocation8 + $0x4] sm:$0xf]
    %v194 = vld [vmem:[#allocation8 + $0x8] sm:$0xf]
    %v195 = vld [vmem:[#allocation8 + $0xc] sm:$0xf]
    %v196 = vld [vmem:[#allocation8 + $0x10] sm:$0xf]
    %v197 = vld [vmem:[#allocation8 + $0x14] sm:$0xf]
    %v198 = vld [vmem:[#allocation8 + $0x18] sm:$0xf]
    %v199 = vld [vmem:[#allocation8 + $0x1c] sm:$0xf]
    %v200 = vld [vmem:[%s6] sm:$0x1]
    %v202 = vperm.slane %v200, 0
    %v212 = vunpack.c.l.b16 %v192
    %v213 = vunpack.c.l.b16 %v193
    %v214 = vunpack.c.l.b16 %v194
    %v215 = vunpack.c.l.b16 %v195
    %v216 = vunpack.c.l.b16 %v196
    %v217 = vunpack.c.l.b16 %v197
    %v218 = vunpack.c.l.b16 %v198
    %v219 = vunpack.c.l.b16 %v199
    %v220 = vpack.c.b16 %v213, %v212
    %v221 = vpack.c.b16 %v215, %v214
    %v222 = vpack.c.b16 %v217, %v216
    %v223 = vpack.c.b16 %v219, %v218
    %v229 = vsel %vm171, %v191, 0
    %231 = vmatpush.bf16.msra.mxu0 0
    %232 = vmatpush.bf16.msra.mxu0 0
    %233 = vmatpush.bf16.msra.mxu0 0
    %234 = vmatpush.bf16.msra.mxu0 0
    %235 = vmatpush.bf16.msra.mxu0 %v223
    %236 = vmatpush.bf16.msra.mxu0 %v222
    %237 = vmatpush.bf16.msra.mxu0 %v221
    %238 = vmatpush.bf16.msra.mxu0 %v220
    %239 = vmatmul.bf16.gmra.mxu0 %v229
    %v240 = vpop.f32.mrf.mxu0
    %v241 = vadd.f32 %v202, %v240
    %v242 = vpop.f32.mrf.mxu0
    %v243 = vadd.f32 %v202, %v242
    %244 = vdwg.mxu0
    %245 = vst [vmem:[#allocation10] sm:$0xff] %v241
    %246 = vst [vmem:[#allocation10 + $0x8] sm:$0xff] %v243
    // Predicated region
    $region46: #{tpu_custom_call.1} parent=1 // pred_check
      _
    $region47: #{tpu_custom_call.1} parent=1 // pred_check_branch
      %248 = sbr.rel (0) target = $region49
    $region48: #{tpu_custom_call.1} parent=1 // pred_region
      %250 = vsyncadd [#allocation4], 128
      %s251 = sshll.u32 [#allocation10], 4
      %s252 = int_to_ptr.vmem [resolvable:$true] %s251
      %s253 = sshll.u32 %s7, 4
      %s254 = int_to_ptr.hbm [resolvable:$true] %s253
      %259 = dma.vmem_to_hbm [thread:$0]  %s252, 128, %s254, [#allocation4], 128, 128, 8
    $region49: #{tpu_custom_call.1} parent=1 // pred_fallthru
      _
    // Predicated region
    $region50: #{tpu_custom_call.1} parent=1 // pred_check
      _
    $region51: #{tpu_custom_call.1} parent=1 // pred_check_branch
      %261 = sbr.rel (0) target = $region53
    $region52: #{tpu_custom_call.1} parent=1 // pred_region
      %263 = dma.done [#allocation4], 256
    $region53: #{tpu_custom_call.1} parent=1 // pred_fallthru
      _
    %264 = vsyncpa [#allocation3], 1
    %265 = vsyncpa [#allocation6], 1
    %266 = vsyncpa [#allocation9], 1
    %267 = vsyncpa [#allocation4], 1

</llo_original>
